<compile_context>
chip_gen: v5e
topology: v5e:2x2
jax: 0.10.0
libtpu: 0.0.40
codegen_flags: <defaults>
</compile_context>

<pallas_src>
import jax
import jax.numpy as jnp
from jax import lax
from jax.experimental import pallas as pl
from jax.experimental.pallas import tpu as pltpu


def _conv_tanh_kernel(w_ref, c_ref, o_ref):
    # w_ref: (N*G*Cout_g, N*G*K)  block-diagonal weight (zeros off-diagonal are
    #        free: K pads to the MXU contraction width regardless)
    # c_ref: (N*G*K, Lpad)        K-stacked im2col columns (batch+group on rows)
    # o_ref: (N*G*Cout_g, Lpad)
    acc = jnp.dot(w_ref[...], c_ref[...],
                  preferred_element_type=jnp.float32,
                  precision=lax.Precision.HIGHEST)
    o_ref[...] = jnp.tanh(acc).astype(o_ref.dtype)


def grouped_conv2d_tanh(x, w, groups):
    """x: (N, Cin, H, W) NCHW;  w: (Cout, Cin_g, KH, KW);  returns (N, Cout, Ho, Wo)."""
    N, Cin, H, W = x.shape
    Cout, Cin_g, KH, KW = w.shape
    G = groups
    assert Cin == G * Cin_g and Cout % G == 0
    Cout_g = Cout // G
    Ho, Wo = H - KH + 1, W - KW + 1
    K = Cin_g * KH * KW                     # stacked contraction dim (=20 here)
    Lout = Ho * Wo
    Lpad = ((Lout + 127) // 128) * 128      # lane-dense stores (unmasked vst)
    NB = N * G                              # number of diagonal blocks

    # ---- prologue (tiny XLA fusions): K-stacked im2col + block-diagonal weights ----
    # patches[n, c, kh*KW+kw, ho, wo] = x[n, c, ho+kh, wo+kw]
    patches = jnp.stack([x[:, :, kh:kh + Ho, kw:kw + Wo]
                         for kh in range(KH) for kw in range(KW)], axis=2)
    cols = patches.reshape(N, G, Cin_g, KH * KW, Ho, Wo)
    cols = cols.reshape(N, G, K, Lout)                          # K-order: (c_g, kh, kw)
    cols = jnp.pad(cols, ((0, 0), (0, 0), (0, 0), (0, Lpad - Lout)))
    cols = cols.reshape(NB * K, Lpad)                           # (N*G*K, Lpad)

    wg = w.reshape(G, Cout_g, K)                                # same K-order as cols
    blocks = jnp.tile(wg, (N, 1, 1))                            # block b = n*G+g -> wg[g]
    eye = jnp.eye(NB, dtype=w.dtype)
    w_big = blocks[:, None, :, :] * eye[:, :, None, None]       # (NB, NB, Cout_g, K)
    w_big = w_big.transpose(0, 2, 1, 3).reshape(NB * Cout_g, NB * K)

    out_flat = pl.pallas_call(
        _conv_tanh_kernel,
        out_shape=jax.ShapeDtypeStruct((NB * Cout_g, Lpad), x.dtype),
        in_specs=[pl.BlockSpec(memory_space=pltpu.MemorySpace.VMEM),
                  pl.BlockSpec(memory_space=pltpu.MemorySpace.VMEM)],
        out_specs=pl.BlockSpec(memory_space=pltpu.MemorySpace.VMEM),
    )(w_big, cols)

    # Rows are already ordered (n, g*Cout_g + o) == (n, cout): no transpose needed.
    out = out_flat.reshape(N, Cout, Lpad)[:, :, :Lout].reshape(N, Cout, Ho, Wo)
    return out


if __name__ == "__main__":
    key = jax.random.PRNGKey(0)
    kx, kw = jax.random.split(key)

    # Small shapes consistent with the module: Cin must be 10 (groups=2).
    N, Cin, H, W = 2, 10, 16, 16
    Cout, groups, KH, KW = 50, 2, 2, 2
    Cin_g = Cin // groups

    x = jax.random.normal(kx, (N, Cin, H, W), dtype=jnp.float32)
    # Deterministic weight init (kaiming-uniform-like scale), shape (50, 5, 2, 2)
    fan_in = Cin_g * KH * KW
    bound = 1.0 / (fan_in ** 0.5)
    w = jax.random.uniform(kw, (Cout, Cin_g, KH, KW),
                           minval=-bound, maxval=bound, dtype=jnp.float32)

    conv_tanh = jax.jit(grouped_conv2d_tanh, static_argnums=2)
    out = conv_tanh(x, w, groups)
    out = jax.block_until_ready(out)

    # Reference check against XLA grouped conv + tanh (same pinned precision)
    ref = jnp.tanh(
        lax.conv_general_dilated(
            x, w, window_strides=(1, 1), padding="VALID",
            dimension_numbers=("NCHW", "OIHW", "NCHW"),
            feature_group_count=groups,
            precision=lax.Precision.HIGHEST,
        )
    )
    assert out.shape == (N, Cout, H - 1, W - 1)
    assert jnp.allclose(out, ref, atol=1e-5, rtol=1e-5)

    print("KERNEL_OK")
</pallas_src>

<mosaic_0001>
module attributes {stable_mosaic.version = 11 : i64} {
  func.func @_conv_tanh_kernel(%arg0: memref<100x80xf32, #tpu.memory_space<vmem>>, %arg1: memref<80x256xf32, #tpu.memory_space<vmem>>, %arg2: memref<100x256xf32, #tpu.memory_space<vmem>>) attributes {dimension_semantics = [], scalar_prefetch = 0 : i64, scratch_operands = 0 : i64, tpu.core_type = #tpu.core_type<tc>} {
    %c0 = arith.constant 0 : index
    %c0_0 = arith.constant 0 : index
    %0 = vector.load %arg0[%c0, %c0_0] : memref<100x80xf32, #tpu.memory_space<vmem>>, vector<100x80xf32>
    %c0_1 = arith.constant 0 : index
    %c0_2 = arith.constant 0 : index
    %1 = vector.load %arg1[%c0_1, %c0_2] : memref<80x256xf32, #tpu.memory_space<vmem>>, vector<80x256xf32>
    %cst = arith.constant dense<0.000000e+00> : vector<100x256xf32>
    %2 = tpu.matmul %0, %1, %cst {dimension_numbers = #tpu.dot_dimension_numbers<[1], [0], [0], [1], [0, 0, 1, 1], [], []>, precision = #tpu.contract_precision<fp32>} : vector<100x80xf32>, vector<80x256xf32>, vector<100x256xf32> -> vector<100x256xf32>
    %3 = math.tanh %2 : vector<100x256xf32>
    %c0_3 = arith.constant 0 : index
    %c0_4 = arith.constant 0 : index
    %4 = vector.load %arg2[%c0_3, %c0_4] : memref<100x256xf32, #tpu.memory_space<vmem>>, vector<100x256xf32>
    tpu.vector_store %arg2[%c0_3, %c0_4], %3 {strides = array<i32>} : memref<100x256xf32, #tpu.memory_space<vmem>>, vector<100x256xf32>,
    return
  }
}

</mosaic_0001>

<llo_original>
// kernel: grouped_conv2d_tanh.1
$region0: #{grouped_conv2d_tanh.1}
  #allocation0 [shape = 'u32[]', space=smem, size = 0x4, offset = 0x4, fixed_abs, tag = 'smem constant byte address 0x4 - core index']
  #allocation1 [shape = 'u32[72,128]{1,0:T(1,128)}', space=vmem, size = 0x9000, scoped, tag = 'internal scratch']
  %s0 = inlined_call_operand.vmem [shape: f32[100,80], index: 0, kind: input, shape index: {}]
  %s1 = inlined_call_operand.vmem [shape: f32[80,256], index: 1, kind: input, shape index: {}]
  %s2 = inlined_call_operand.vmem [shape: f32[100,256], index: 2, kind: output, shape index: {}]
  %s3 = sld [smem:[#allocation0]]
  $region18: #{grouped_conv2d_tanh.1} parent=0
    _
  %s5 = ssub.s32 1, %s3
  %s6 = scalar_select 0, %s5, %s3
  // Predicated region
  $region2: #{grouped_conv2d_tanh.1} parent=0 // pred_check
    _
  $region3: #{grouped_conv2d_tanh.1} parent=0 // pred_check_branch
    %8 = sbr.rel (0) target = $region5
  $region4: #{grouped_conv2d_tanh.1} parent=0 // pred_region
    _
  $region5: #{grouped_conv2d_tanh.1} parent=0 // pred_fallthru
    _
  // Predicated region
  $region6: #{grouped_conv2d_tanh.1} parent=0 // pred_check
    _
  $region7: #{grouped_conv2d_tanh.1} parent=0 // pred_check_branch
    %10 = sbr.rel (0) target = $region9
  $region8: #{grouped_conv2d_tanh.1} parent=0 // pred_region
    _
  $region9: #{grouped_conv2d_tanh.1} parent=0 // pred_fallthru
    _
  %v11 = vld [vmem:[%s0] sm:$0xff]
  %v12 = vld [vmem:[%s0 + $0x8] sm:$0xff]
  %v13 = vld [vmem:[%s0 + $0x10] sm:$0xff]
  %v14 = vld [vmem:[%s0 + $0x18] sm:$0xff]
  %v15 = vld [vmem:[%s0 + $0x20] sm:$0xff]
  %v16 = vld [vmem:[%s0 + $0x28] sm:$0xff]
  %v17 = vld [vmem:[%s0 + $0x30] sm:$0xff]
  %v18 = vld [vmem:[%s0 + $0x38] sm:$0xff]
  %v19 = vld [vmem:[%s0 + $0x40] sm:$0xff]
  %v20 = vld [vmem:[%s0 + $0x48] sm:$0xff]
  %v21 = vld [vmem:[%s0 + $0x50] sm:$0xff]
  %v22 = vld [vmem:[%s0 + $0x58] sm:$0xff]
  %v23 = vld [vmem:[%s0 + $0x60] sm:$0xf]
  %v24 = vld [vmem:[%s1] sm:$0xff]
  %v25 = vld [vmem:[%s1 + $0x8] sm:$0xff]
  %v26 = vld [vmem:[%s1 + $0x10] sm:$0xff]
  %v27 = vld [vmem:[%s1 + $0x18] sm:$0xff]
  %v28 = vld [vmem:[%s1 + $0x20] sm:$0xff]
  %v29 = vld [vmem:[%s1 + $0x28] sm:$0xff]
  %v30 = vld [vmem:[%s1 + $0x30] sm:$0xff]
  %v31 = vld [vmem:[%s1 + $0x38] sm:$0xff]
  %v32 = vld [vmem:[%s1 + $0x40] sm:$0xff]
  %v33 = vld [vmem:[%s1 + $0x48] sm:$0xff]
  %v34 = vld [vmem:[%s1 + $0x50] sm:$0xff]
  %v35 = vld [vmem:[%s1 + $0x58] sm:$0xff]
  %v36 = vld [vmem:[%s1 + $0x60] sm:$0xff]
  %v37 = vld [vmem:[%s1 + $0x68] sm:$0xff]
  %v38 = vld [vmem:[%s1 + $0x70] sm:$0xff]
  %v39 = vld [vmem:[%s1 + $0x78] sm:$0xff]
  %v40 = vld [vmem:[%s1 + $0x80] sm:$0xff]
  %v41 = vld [vmem:[%s1 + $0x88] sm:$0xff]
  %v42 = vld [vmem:[%s1 + $0x90] sm:$0xff]
  %v43 = vld [vmem:[%s1 + $0x98] sm:$0xff]
  %vm44 = vcmask 654336
  %v46 = vsel %vm44, %v11, 0
  %v49 = vsel %vm44, %v12, 0
  %v52 = vsel %vm44, %v13, 0
  %v55 = vsel %vm44, %v14, 0
  %v58 = vsel %vm44, %v15, 0
  %v61 = vsel %vm44, %v16, 0
  %v64 = vsel %vm44, %v17, 0
  %v67 = vsel %vm44, %v18, 0
  %v70 = vsel %vm44, %v19, 0
  %v73 = vsel %vm44, %v20, 0
  %v76 = vsel %vm44, %v21, 0
  %v79 = vsel %vm44, %v22, 0
  %v82 = vsel %vm44, %v23, 0
  %84 = vmatpush.msra.mxu0 0.0
  %85 = vmatpush.msra.mxu0 0.0
  %86 = vmatpush.msra.mxu0 0.0
  %87 = vmatpush.msra.mxu0 0.0
  %88 = vmatpush.msra.mxu0 0.0
  %89 = vmatpush.msra.mxu0 0.0
  %v90 = vand.u32 %v42, 4294901760
  %91 = vmatpush.msra.mxu0 %v90
  %v92 = vand.u32 %v40, 4294901760
  %93 = vmatpush.msra.mxu0 %v92
  %v94 = vand.u32 %v38, 4294901760
  %95 = vmatpush.msra.mxu0 %v94
  %v96 = vand.u32 %v36, 4294901760
  %97 = vmatpush.msra.mxu0 %v96
  %v98 = vand.u32 %v34, 4294901760
  %99 = vmatpush.msra.mxu0 %v98
  %v100 = vand.u32 %v32, 4294901760
  %101 = vmatpush.msra.mxu0 %v100
  %v102 = vand.u32 %v30, 4294901760
  %103 = vmatpush.msra.mxu0 %v102
  %v104 = vand.u32 %v28, 4294901760
  %105 = vmatpush.msra.mxu0 %v104
  %v106 = vand.u32 %v26, 4294901760
  %107 = vmatpush.msra.mxu0 %v106
  %v108 = vand.u32 %v24, 4294901760
  %109 = vmatpush.msra.mxu0 %v108
  %v110 = vand.u32 %v46, 4294901760
  %v111 = vsub.f32 %v46, %v110
  %v112 = vand.u32 %v111, 4294901760
  %v113 = vsub.f32 %v111, %v112
  %v114 = vand.u32 %v113, 4294901760
  %115 = vmatmul.f32.gmra.mxu0 %v114
  %v116 = vpop.f32.mrf.mxu0
  %v117 = vadd.f32 0.0, %v116
  %v118 = vand.u32 %v49, 4294901760
  %v119 = vsub.f32 %v49, %v118
  %v120 = vand.u32 %v119, 4294901760
  %v121 = vsub.f32 %v119, %v120
  %v122 = vand.u32 %v121, 4294901760
  %123 = vmatmul.f32.gmra.mxu0 %v122
  %v124 = vpop.f32.mrf.mxu0
  %v125 = vadd.f32 0.0, %v124
  %v126 = vand.u32 %v52, 4294901760
  %v127 = vsub.f32 %v52, %v126
  %v128 = vand.u32 %v127, 4294901760
  %v129 = vsub.f32 %v127, %v128
  %v130 = vand.u32 %v129, 4294901760
  %131 = vmatmul.f32.gmra.mxu0 %v130
  %v132 = vpop.f32.mrf.mxu0
  %v133 = vadd.f32 0.0, %v132
  %v134 = vand.u32 %v55, 4294901760
  %v135 = vsub.f32 %v55, %v134
  %v136 = vand.u32 %v135, 4294901760
  %v137 = vsub.f32 %v135, %v136
  %v138 = vand.u32 %v137, 4294901760
  %139 = vmatmul.f32.gmra.mxu0 %v138
  %v140 = vpop.f32.mrf.mxu0
  %v141 = vadd.f32 0.0, %v140
  %v142 = vand.u32 %v58, 4294901760
  %v143 = vsub.f32 %v58, %v142
  %v144 = vand.u32 %v143, 4294901760
  %v145 = vsub.f32 %v143, %v144
  %v146 = vand.u32 %v145, 4294901760
  %147 = vmatmul.f32.gmra.mxu0 %v146
  %v148 = vpop.f32.mrf.mxu0
  %v149 = vadd.f32 0.0, %v148
  %v150 = vand.u32 %v61, 4294901760
  %v151 = vsub.f32 %v61, %v150
  %v152 = vand.u32 %v151, 4294901760
  %v153 = vsub.f32 %v151, %v152
  %v154 = vand.u32 %v153, 4294901760
  %155 = vmatmul.f32.gmra.mxu0 %v154
  %v156 = vpop.f32.mrf.mxu0
  %v157 = vadd.f32 0.0, %v156
  %v158 = vand.u32 %v64, 4294901760
  %v159 = vsub.f32 %v64, %v158
  %v160 = vand.u32 %v159, 4294901760
  %v161 = vsub.f32 %v159, %v160
  %v162 = vand.u32 %v161, 4294901760
  %163 = vmatmul.f32.gmra.mxu0 %v162
  %v164 = vpop.f32.mrf.mxu0
  %v165 = vadd.f32 0.0, %v164
  %v166 = vand.u32 %v67, 4294901760
  %v167 = vsub.f32 %v67, %v166
  %v168 = vand.u32 %v167, 4294901760
  %v169 = vsub.f32 %v167, %v168
  %v170 = vand.u32 %v169, 4294901760
  %171 = vmatmul.f32.gmra.mxu0 %v170
  %v172 = vpop.f32.mrf.mxu0
  %v173 = vadd.f32 0.0, %v172
  %v174 = vand.u32 %v70, 4294901760
  %v175 = vsub.f32 %v70, %v174
  %v176 = vand.u32 %v175, 4294901760
  %v177 = vsub.f32 %v175, %v176
  %v178 = vand.u32 %v177, 4294901760
  %179 = vmatmul.f32.gmra.mxu0 %v178
  %v180 = vpop.f32.mrf.mxu0
  %v181 = vadd.f32 0.0, %v180
  %v182 = vand.u32 %v73, 4294901760
  %v183 = vsub.f32 %v73, %v182
  %v184 = vand.u32 %v183, 4294901760
  %v185 = vsub.f32 %v183, %v184
  %v186 = vand.u32 %v185, 4294901760
  %187 = vmatmul.f32.gmra.mxu0 %v186
  %v188 = vpop.f32.mrf.mxu0
  %v189 = vadd.f32 0.0, %v188
  %v190 = vand.u32 %v76, 4294901760
  %v191 = vsub.f32 %v76, %v190
  %v192 = vand.u32 %v191, 4294901760
  %v193 = vsub.f32 %v191, %v192
  %v194 = vand.u32 %v193, 4294901760
  %195 = vmatmul.f32.gmra.mxu0 %v194
  %v196 = vpop.f32.mrf.mxu0
  %v197 = vadd.f32 0.0, %v196
  %v198 = vand.u32 %v79, 4294901760
  %v199 = vsub.f32 %v79, %v198
  %v200 = vand.u32 %v199, 4294901760
  %v201 = vsub.f32 %v199, %v200
  %v202 = vand.u32 %v201, 4294901760
  %203 = vmatmul.f32.gmra.mxu0 %v202
  %v204 = vpop.f32.mrf.mxu0
  %v205 = vadd.f32 0.0, %v204
  %v206 = vand.u32 %v82, 4294901760
  %v207 = vsub.f32 %v82, %v206
  %v208 = vand.u32 %v207, 4294901760
  %v209 = vsub.f32 %v207, %v208
  %v210 = vand.u32 %v209, 4294901760
  %211 = vmatmul.f32.gmra.mxu0 %v210
  %v212 = vpop.f32.mrf.mxu0
  %v213 = vadd.f32 0.0, %v212
  %214 = vdwg.mxu0
  %215 = vmatpush.msra.mxu0 0.0
  %216 = vmatpush.msra.mxu0 0.0
  %217 = vmatpush.msra.mxu0 0.0
  %218 = vmatpush.msra.mxu0 0.0
  %219 = vmatpush.msra.mxu0 0.0
  %220 = vmatpush.msra.mxu0 0.0
  %v221 = vand.u32 %v42, 4294901760
  %v222 = vsub.f32 %v42, %v221
  %v223 = vand.u32 %v222, 4294901760
  %v224 = vsub.f32 %v222, %v223
  %v225 = vand.u32 %v224, 4294901760
  %226 = vmatpush.msra.mxu0 %v225
  %v227 = vand.u32 %v40, 4294901760
  %v228 = vsub.f32 %v40, %v227
  %v229 = vand.u32 %v228, 4294901760
  %v230 = vsub.f32 %v228, %v229
  %v231 = vand.u32 %v230, 4294901760
  %232 = vmatpush.msra.mxu0 %v231
  %v233 = vand.u32 %v38, 4294901760
  %v234 = vsub.f32 %v38, %v233
  %v235 = vand.u32 %v234, 4294901760
  %v236 = vsub.f32 %v234, %v235
  %v237 = vand.u32 %v236, 4294901760
  %238 = vmatpush.msra.mxu0 %v237
  %v239 = vand.u32 %v36, 4294901760
  %v240 = vsub.f32 %v36, %v239
  %v241 = vand.u32 %v240, 4294901760
  %v242 = vsub.f32 %v240, %v241
  %v243 = vand.u32 %v242, 4294901760
  %244 = vmatpush.msra.mxu0 %v243
  %v245 = vand.u32 %v34, 4294901760
  %v246 = vsub.f32 %v34, %v245
  %v247 = vand.u32 %v246, 4294901760
  %v248 = vsub.f32 %v246, %v247
  %v249 = vand.u32 %v248, 4294901760
  %250 = vmatpush.msra.mxu0 %v249
  %v251 = vand.u32 %v32, 4294901760
  %v252 = vsub.f32 %v32, %v251
  %v253 = vand.u32 %v252, 4294901760
  %v254 = vsub.f32 %v252, %v253
  %v255 = vand.u32 %v254, 4294901760
  %256 = vmatpush.msra.mxu0 %v255
  %v257 = vand.u32 %v30, 4294901760
  %v258 = vsub.f32 %v30, %v257
  %v259 = vand.u32 %v258, 4294901760
  %v260 = vsub.f32 %v258, %v259
  %v261 = vand.u32 %v260, 4294901760
  %262 = vmatpush.msra.mxu0 %v261
  %v263 = vand.u32 %v28, 4294901760
  %v264 = vsub.f32 %v28, %v263
  %v265 = vand.u32 %v264, 4294901760
  %v266 = vsub.f32 %v264, %v265
  %v267 = vand.u32 %v266, 4294901760
  %268 = vmatpush.msra.mxu0 %v267
  %v269 = vand.u32 %v26, 4294901760
  %v270 = vsub.f32 %v26, %v269
  %v271 = vand.u32 %v270, 4294901760
  %v272 = vsub.f32 %v270, %v271
  %v273 = vand.u32 %v272, 4294901760
  %274 = vmatpush.msra.mxu0 %v273
  %v275 = vand.u32 %v24, 4294901760
  %v276 = vsub.f32 %v24, %v275
  %v277 = vand.u32 %v276, 4294901760
  %v278 = vsub.f32 %v276, %v277
  %v279 = vand.u32 %v278, 4294901760
  %280 = vmatpush.msra.mxu0 %v279
  %v281 = vand.u32 %v46, 4294901760
  %282 = vmatmul.f32.gmra.mxu0 %v281
  %v283 = vpop.f32.mrf.mxu0
  %v284 = vadd.f32 %v117, %v283
  %v285 = vand.u32 %v49, 4294901760
  %286 = vmatmul.f32.gmra.mxu0 %v285
  %v287 = vpop.f32.mrf.mxu0
  %v288 = vadd.f32 %v125, %v287
  %v289 = vand.u32 %v52, 4294901760
  %290 = vmatmul.f32.gmra.mxu0 %v289
  %v291 = vpop.f32.mrf.mxu0
  %v292 = vadd.f32 %v133, %v291
  %v293 = vand.u32 %v55, 4294901760
  %294 = vmatmul.f32.gmra.mxu0 %v293
  %v295 = vpop.f32.mrf.mxu0
  %v296 = vadd.f32 %v141, %v295
  %v297 = vand.u32 %v58, 4294901760
  %298 = vmatmul.f32.gmra.mxu0 %v297
  %v299 = vpop.f32.mrf.mxu0
  %v300 = vadd.f32 %v149, %v299
  %v301 = vand.u32 %v61, 4294901760
  %302 = vmatmul.f32.gmra.mxu0 %v301
  %v303 = vpop.f32.mrf.mxu0
  %v304 = vadd.f32 %v157, %v303
  %v305 = vand.u32 %v64, 4294901760
  %306 = vmatmul.f32.gmra.mxu0 %v305
  %v307 = vpop.f32.mrf.mxu0
  %v308 = vadd.f32 %v165, %v307
  %v309 = vand.u32 %v67, 4294901760
  %310 = vmatmul.f32.gmra.mxu0 %v309
  %v311 = vpop.f32.mrf.mxu0
  %v312 = vadd.f32 %v173, %v311
  %v313 = vand.u32 %v70, 4294901760
  %314 = vmatmul.f32.gmra.mxu0 %v313
  %v315 = vpop.f32.mrf.mxu0
  %v316 = vadd.f32 %v181, %v315
  %v317 = vand.u32 %v73, 4294901760
  %318 = vmatmul.f32.gmra.mxu0 %v317
  %v319 = vpop.f32.mrf.mxu0
  %v320 = vadd.f32 %v189, %v319
  %v321 = vand.u32 %v76, 4294901760
  %322 = vmatmul.f32.gmra.mxu0 %v321
  %v323 = vpop.f32.mrf.mxu0
  %v324 = vadd.f32 %v197, %v323
  %v325 = vand.u32 %v79, 4294901760
  %326 = vmatmul.f32.gmra.mxu0 %v325
  %v327 = vpop.f32.mrf.mxu0
  %v328 = vadd.f32 %v205, %v327
  %v329 = vand.u32 %v82, 4294901760
  %330 = vmatmul.f32.gmra.mxu0 %v329
  %v331 = vpop.f32.mrf.mxu0
  %v332 = vadd.f32 %v213, %v331
  %333 = vdwg.mxu0
  %334 = vmatpush.msra.mxu0 0.0
  %335 = vmatpush.msra.mxu0 0.0
  %336 = vmatpush.msra.mxu0 0.0
  %337 = vmatpush.msra.mxu0 0.0
  %338 = vmatpush.msra.mxu0 0.0
  %339 = vmatpush.msra.mxu0 0.0
  %v340 = vand.u32 %v42, 4294901760
  %v341 = vsub.f32 %v42, %v340
  %342 = vmatpush.msra.mxu0 %v341
  %v343 = vand.u32 %v40, 4294901760
  %v344 = vsub.f32 %v40, %v343
  %345 = vmatpush.msra.mxu0 %v344
  %v346 = vand.u32 %v38, 4294901760
  %v347 = vsub.f32 %v38, %v346
  %348 = vmatpush.msra.mxu0 %v347
  %v349 = vand.u32 %v36, 4294901760
  %v350 = vsub.f32 %v36, %v349
  %351 = vmatpush.msra.mxu0 %v350
  %v352 = vand.u32 %v34, 4294901760
  %v353 = vsub.f32 %v34, %v352
  %354 = vmatpush.msra.mxu0 %v353
  %v355 = vand.u32 %v32, 4294901760
  %v356 = vsub.f32 %v32, %v355
  %357 = vmatpush.msra.mxu0 %v356
  %v358 = vand.u32 %v30, 4294901760
  %v359 = vsub.f32 %v30, %v358
  %360 = vmatpush.msra.mxu0 %v359
  %v361 = vand.u32 %v28, 4294901760
  %v362 = vsub.f32 %v28, %v361
  %363 = vmatpush.msra.mxu0 %v362
  %v364 = vand.u32 %v26, 4294901760
  %v365 = vsub.f32 %v26, %v364
  %366 = vmatpush.msra.mxu0 %v365
  %v367 = vand.u32 %v24, 4294901760
  %v368 = vsub.f32 %v24, %v367
  %369 = vmatpush.msra.mxu0 %v368
  %v370 = vand.u32 %v46, 4294901760
  %v371 = vsub.f32 %v46, %v370
  %372 = vmatmul.f32.gmra.mxu0 %v371
  %v373 = vpop.f32.mrf.mxu0
  %v374 = vadd.f32 %v284, %v373
  %v375 = vand.u32 %v49, 4294901760
  %v376 = vsub.f32 %v49, %v375
  %377 = vmatmul.f32.gmra.mxu0 %v376
  %v378 = vpop.f32.mrf.mxu0
  %v379 = vadd.f32 %v288, %v378
  %v380 = vand.u32 %v52, 4294901760
  %v381 = vsub.f32 %v52, %v380
  %382 = vmatmul.f32.gmra.mxu0 %v381
  %v383 = vpop.f32.mrf.mxu0
  %v384 = vadd.f32 %v292, %v383
  %v385 = vand.u32 %v55, 4294901760
  %v386 = vsub.f32 %v55, %v385
  %387 = vmatmul.f32.gmra.mxu0 %v386
  %v388 = vpop.f32.mrf.mxu0
  %v389 = vadd.f32 %v296, %v388
  %v390 = vand.u32 %v58, 4294901760
  %v391 = vsub.f32 %v58, %v390
  %392 = vmatmul.f32.gmra.mxu0 %v391
  %v393 = vpop.f32.mrf.mxu0
  %v394 = vadd.f32 %v300, %v393
  %v395 = vand.u32 %v61, 4294901760
  %v396 = vsub.f32 %v61, %v395
  %397 = vmatmul.f32.gmra.mxu0 %v396
  %v398 = vpop.f32.mrf.mxu0
  %v399 = vadd.f32 %v304, %v398
  %v400 = vand.u32 %v64, 4294901760
  %v401 = vsub.f32 %v64, %v400
  %402 = vmatmul.f32.gmra.mxu0 %v401
  %v403 = vpop.f32.mrf.mxu0
  %v404 = vadd.f32 %v308, %v403
  %v405 = vand.u32 %v67, 4294901760
  %v406 = vsub.f32 %v67, %v405
  %407 = vmatmul.f32.gmra.mxu0 %v406
  %v408 = vpop.f32.mrf.mxu0
  %v409 = vadd.f32 %v312, %v408
  %v410 = vand.u32 %v70, 4294901760
  %v411 = vsub.f32 %v70, %v410
  %412 = vmatmul.f32.gmra.mxu0 %v411
  %v413 = vpop.f32.mrf.mxu0
  %v414 = vadd.f32 %v316, %v413
  %v415 = vand.u32 %v73, 4294901760
  %v416 = vsub.f32 %v73, %v415
  %417 = vmatmul.f32.gmra.mxu0 %v416
  %v418 = vpop.f32.mrf.mxu0
  %v419 = vadd.f32 %v320, %v418
  %v420 = vand.u32 %v76, 4294901760
  %v421 = vsub.f32 %v76, %v420
  %422 = vmatmul.f32.gmra.mxu0 %v421
  %v423 = vpop.f32.mrf.mxu0
  %v424 = vadd.f32 %v324, %v423
  %v425 = vand.u32 %v79, 4294901760
  %v426 = vsub.f32 %v79, %v425
  %427 = vmatmul.f32.gmra.mxu0 %v426
  %v428 = vpop.f32.mrf.mxu0
  %v429 = vadd.f32 %v328, %v428
  %v430 = vand.u32 %v82, 4294901760
  %v431 = vsub.f32 %v82, %v430
  %432 = vmatmul.f32.gmra.mxu0 %v431
  %v433 = vpop.f32.mrf.mxu0
  %v434 = vadd.f32 %v332, %v433
  %435 = vdwg.mxu0
  %436 = vmatpush.msra.mxu0 0.0
  %437 = vmatpush.msra.mxu0 0.0
  %438 = vmatpush.msra.mxu0 0.0
  %439 = vmatpush.msra.mxu0 0.0
  %440 = vmatpush.msra.mxu0 0.0
  %441 = vmatpush.msra.mxu0 0.0
  %v442 = vand.u32 %v42, 4294901760
  %443 = vmatpush.msra.mxu0 %v442
  %v444 = vand.u32 %v40, 4294901760
  %445 = vmatpush.msra.mxu0 %v444
  %v446 = vand.u32 %v38, 4294901760
  %447 = vmatpush.msra.mxu0 %v446
  %v448 = vand.u32 %v36, 4294901760
  %449 = vmatpush.msra.mxu0 %v448
  %v450 = vand.u32 %v34, 4294901760
  %451 = vmatpush.msra.mxu0 %v450
  %v452 = vand.u32 %v32, 4294901760
  %453 = vmatpush.msra.mxu0 %v452
  %v454 = vand.u32 %v30, 4294901760
  %455 = vmatpush.msra.mxu0 %v454
  %v456 = vand.u32 %v28, 4294901760
  %457 = vmatpush.msra.mxu0 %v456
  %v458 = vand.u32 %v26, 4294901760
  %459 = vmatpush.msra.mxu0 %v458
  %v460 = vand.u32 %v24, 4294901760
  %461 = vmatpush.msra.mxu0 %v460
  %v462 = vand.u32 %v46, 4294901760
  %v463 = vsub.f32 %v46, %v462
  %v464 = vand.u32 %v463, 4294901760
  %465 = vmatmul.f32.gmra.mxu0 %v464
  %v466 = vpop.f32.mrf.mxu0
  %v467 = vadd.f32 %v374, %v466
  %v468 = vand.u32 %v49, 4294901760
  %v469 = vsub.f32 %v49, %v468
  %v470 = vand.u32 %v469, 4294901760
  %471 = vmatmul.f32.gmra.mxu0 %v470
  %v472 = vpop.f32.mrf.mxu0
  %v473 = vadd.f32 %v379, %v472
  %v474 = vand.u32 %v52, 4294901760
  %v475 = vsub.f32 %v52, %v474
  %v476 = vand.u32 %v475, 4294901760
  %477 = vmatmul.f32.gmra.mxu0 %v476
  %v478 = vpop.f32.mrf.mxu0
  %v479 = vadd.f32 %v384, %v478
  %v480 = vand.u32 %v55, 4294901760
  %v481 = vsub.f32 %v55, %v480
  %v482 = vand.u32 %v481, 4294901760
  %483 = vmatmul.f32.gmra.mxu0 %v482
  %v484 = vpop.f32.mrf.mxu0
  %v485 = vadd.f32 %v389, %v484
  %v486 = vand.u32 %v58, 4294901760
  %v487 = vsub.f32 %v58, %v486
  %v488 = vand.u32 %v487, 4294901760
  %489 = vmatmul.f32.gmra.mxu0 %v488
  %v490 = vpop.f32.mrf.mxu0
  %v491 = vadd.f32 %v394, %v490
  %v492 = vand.u32 %v61, 4294901760
  %v493 = vsub.f32 %v61, %v492
  %v494 = vand.u32 %v493, 4294901760
  %495 = vmatmul.f32.gmra.mxu0 %v494
  %v496 = vpop.f32.mrf.mxu0
  %v497 = vadd.f32 %v399, %v496
  %v498 = vand.u32 %v64, 4294901760
  %v499 = vsub.f32 %v64, %v498
  %v500 = vand.u32 %v499, 4294901760
  %501 = vmatmul.f32.gmra.mxu0 %v500
  %v502 = vpop.f32.mrf.mxu0
  %v503 = vadd.f32 %v404, %v502
  %v504 = vand.u32 %v67, 4294901760
  %v505 = vsub.f32 %v67, %v504
  %v506 = vand.u32 %v505, 4294901760
  %507 = vmatmul.f32.gmra.mxu0 %v506
  %v508 = vpop.f32.mrf.mxu0
  %v509 = vadd.f32 %v409, %v508
  %v510 = vand.u32 %v70, 4294901760
  %v511 = vsub.f32 %v70, %v510
  %v512 = vand.u32 %v511, 4294901760
  %513 = vmatmul.f32.gmra.mxu0 %v512
  %v514 = vpop.f32.mrf.mxu0
  %v515 = vadd.f32 %v414, %v514
  %v516 = vand.u32 %v73, 4294901760
  %v517 = vsub.f32 %v73, %v516
  %v518 = vand.u32 %v517, 4294901760
  %519 = vmatmul.f32.gmra.mxu0 %v518
  %v520 = vpop.f32.mrf.mxu0
  %v521 = vadd.f32 %v419, %v520
  %v522 = vand.u32 %v76, 4294901760
  %v523 = vsub.f32 %v76, %v522
  %v524 = vand.u32 %v523, 4294901760
  %525 = vmatmul.f32.gmra.mxu0 %v524
  %v526 = vpop.f32.mrf.mxu0
  %v527 = vadd.f32 %v424, %v526
  %v528 = vand.u32 %v79, 4294901760
  %v529 = vsub.f32 %v79, %v528
  %v530 = vand.u32 %v529, 4294901760
  %531 = vmatmul.f32.gmra.mxu0 %v530
  %v532 = vpop.f32.mrf.mxu0
  %v533 = vadd.f32 %v429, %v532
  %v534 = vand.u32 %v82, 4294901760
  %v535 = vsub.f32 %v82, %v534
  %v536 = vand.u32 %v535, 4294901760
  %537 = vmatmul.f32.gmra.mxu0 %v536
  %v538 = vpop.f32.mrf.mxu0
  %v539 = vadd.f32 %v434, %v538
  %540 = vdwg.mxu0
  %541 = vmatpush.msra.mxu0 0.0
  %542 = vmatpush.msra.mxu0 0.0
  %543 = vmatpush.msra.mxu0 0.0
  %544 = vmatpush.msra.mxu0 0.0
  %545 = vmatpush.msra.mxu0 0.0
  %546 = vmatpush.msra.mxu0 0.0
  %v547 = vand.u32 %v42, 4294901760
  %v548 = vsub.f32 %v42, %v547
  %v549 = vand.u32 %v548, 4294901760
  %550 = vmatpush.msra.mxu0 %v549
  %v551 = vand.u32 %v40, 4294901760
  %v552 = vsub.f32 %v40, %v551
  %v553 = vand.u32 %v552, 4294901760
  %554 = vmatpush.msra.mxu0 %v553
  %v555 = vand.u32 %v38, 4294901760
  %v556 = vsub.f32 %v38, %v555
  %v557 = vand.u32 %v556, 4294901760
  %558 = vmatpush.msra.mxu0 %v557
  %v559 = vand.u32 %v36, 4294901760
  %v560 = vsub.f32 %v36, %v559
  %v561 = vand.u32 %v560, 4294901760
  %562 = vmatpush.msra.mxu0 %v561
  %v563 = vand.u32 %v34, 4294901760
  %v564 = vsub.f32 %v34, %v563
  %v565 = vand.u32 %v564, 4294901760
  %566 = vmatpush.msra.mxu0 %v565
  %v567 = vand.u32 %v32, 4294901760
  %v568 = vsub.f32 %v32, %v567
  %v569 = vand.u32 %v568, 4294901760
  %570 = vmatpush.msra.mxu0 %v569
  %v571 = vand.u32 %v30, 4294901760
  %v572 = vsub.f32 %v30, %v571
  %v573 = vand.u32 %v572, 4294901760
  %574 = vmatpush.msra.mxu0 %v573
  %v575 = vand.u32 %v28, 4294901760
  %v576 = vsub.f32 %v28, %v575
  %v577 = vand.u32 %v576, 4294901760
  %578 = vmatpush.msra.mxu0 %v577
  %v579 = vand.u32 %v26, 4294901760
  %v580 = vsub.f32 %v26, %v579
  %v581 = vand.u32 %v580, 4294901760
  %582 = vmatpush.msra.mxu0 %v581
  %v583 = vand.u32 %v24, 4294901760
  %v584 = vsub.f32 %v24, %v583
  %v585 = vand.u32 %v584, 4294901760
  %586 = vmatpush.msra.mxu0 %v585
  %v587 = vand.u32 %v46, 4294901760
  %588 = vmatmul.f32.gmra.mxu0 %v587
  %v589 = vpop.f32.mrf.mxu0
  %v590 = vadd.f32 %v467, %v589
  %v591 = vand.u32 %v49, 4294901760
  %592 = vmatmul.f32.gmra.mxu0 %v591
  %v593 = vpop.f32.mrf.mxu0
  %v594 = vadd.f32 %v473, %v593
  %v595 = vand.u32 %v52, 4294901760
  %596 = vmatmul.f32.gmra.mxu0 %v595
  %v597 = vpop.f32.mrf.mxu0
  %v598 = vadd.f32 %v479, %v597
  %v599 = vand.u32 %v55, 4294901760
  %600 = vmatmul.f32.gmra.mxu0 %v599
  %v601 = vpop.f32.mrf.mxu0
  %v602 = vadd.f32 %v485, %v601
  %v603 = vand.u32 %v58, 4294901760
  %604 = vmatmul.f32.gmra.mxu0 %v603
  %v605 = vpop.f32.mrf.mxu0
  %v606 = vadd.f32 %v491, %v605
  %v607 = vand.u32 %v61, 4294901760
  %608 = vmatmul.f32.gmra.mxu0 %v607
  %v609 = vpop.f32.mrf.mxu0
  %v610 = vadd.f32 %v497, %v609
  %v611 = vand.u32 %v64, 4294901760
  %612 = vmatmul.f32.gmra.mxu0 %v611
  %v613 = vpop.f32.mrf.mxu0
  %v614 = vadd.f32 %v503, %v613
  %v615 = vand.u32 %v67, 4294901760
  %616 = vmatmul.f32.gmra.mxu0 %v615
  %v617 = vpop.f32.mrf.mxu0
  %v618 = vadd.f32 %v509, %v617
  %v619 = vand.u32 %v70, 4294901760
  %620 = vmatmul.f32.gmra.mxu0 %v619
  %v621 = vpop.f32.mrf.mxu0
  %v622 = vadd.f32 %v515, %v621
  %v623 = vand.u32 %v73, 4294901760
  %624 = vmatmul.f32.gmra.mxu0 %v623
  %v625 = vpop.f32.mrf.mxu0
  %v626 = vadd.f32 %v521, %v625
  %v627 = vand.u32 %v76, 4294901760
  %628 = vmatmul.f32.gmra.mxu0 %v627
  %v629 = vpop.f32.mrf.mxu0
  %v630 = vadd.f32 %v527, %v629
  %v631 = vand.u32 %v79, 4294901760
  %632 = vmatmul.f32.gmra.mxu0 %v631
  %v633 = vpop.f32.mrf.mxu0
  %v634 = vadd.f32 %v533, %v633
  %v635 = vand.u32 %v82, 4294901760
  %636 = vmatmul.f32.gmra.mxu0 %v635
  %v637 = vpop.f32.mrf.mxu0
  %v638 = vadd.f32 %v539, %v637
  %639 = vdwg.mxu0
  %640 = vmatpush.msra.mxu0 0.0
  %641 = vmatpush.msra.mxu0 0.0
  %642 = vmatpush.msra.mxu0 0.0
  %643 = vmatpush.msra.mxu0 0.0
  %644 = vmatpush.msra.mxu0 0.0
  %645 = vmatpush.msra.mxu0 0.0
  %v646 = vand.u32 %v42, 4294901760
  %647 = vmatpush.msra.mxu0 %v646
  %v648 = vand.u32 %v40, 4294901760
  %649 = vmatpush.msra.mxu0 %v648
  %v650 = vand.u32 %v38, 4294901760
  %651 = vmatpush.msra.mxu0 %v650
  %v652 = vand.u32 %v36, 4294901760
  %653 = vmatpush.msra.mxu0 %v652
  %v654 = vand.u32 %v34, 4294901760
  %655 = vmatpush.msra.mxu0 %v654
  %v656 = vand.u32 %v32, 4294901760
  %657 = vmatpush.msra.mxu0 %v656
  %v658 = vand.u32 %v30, 4294901760
  %659 = vmatpush.msra.mxu0 %v658
  %v660 = vand.u32 %v28, 4294901760
  %661 = vmatpush.msra.mxu0 %v660
  %v662 = vand.u32 %v26, 4294901760
  %663 = vmatpush.msra.mxu0 %v662
  %v664 = vand.u32 %v24, 4294901760
  %665 = vmatpush.msra.mxu0 %v664
  %v666 = vand.u32 %v46, 4294901760
  %667 = vmatmul.f32.gmra.mxu0 %v666
  %v668 = vpop.f32.mrf.mxu0
  %v669 = vadd.f32 %v590, %v668
  %v670 = vand.u32 %v49, 4294901760
  %671 = vmatmul.f32.gmra.mxu0 %v670
  %v672 = vpop.f32.mrf.mxu0
  %v673 = vadd.f32 %v594, %v672
  %v674 = vand.u32 %v52, 4294901760
  %675 = vmatmul.f32.gmra.mxu0 %v674
  %v676 = vpop.f32.mrf.mxu0
  %v677 = vadd.f32 %v598, %v676
  %v678 = vand.u32 %v55, 4294901760
  %679 = vmatmul.f32.gmra.mxu0 %v678
  %v680 = vpop.f32.mrf.mxu0
  %v681 = vadd.f32 %v602, %v680
  %v682 = vand.u32 %v58, 4294901760
  %683 = vmatmul.f32.gmra.mxu0 %v682
  %v684 = vpop.f32.mrf.mxu0
  %v685 = vadd.f32 %v606, %v684
  %v686 = vand.u32 %v61, 4294901760
  %687 = vmatmul.f32.gmra.mxu0 %v686
  %v688 = vpop.f32.mrf.mxu0
  %v689 = vadd.f32 %v610, %v688
  %v690 = vand.u32 %v64, 4294901760
  %691 = vmatmul.f32.gmra.mxu0 %v690
  %v692 = vpop.f32.mrf.mxu0
  %v693 = vadd.f32 %v614, %v692
  %v694 = vand.u32 %v67, 4294901760
  %695 = vmatmul.f32.gmra.mxu0 %v694
  %v696 = vpop.f32.mrf.mxu0
  %v697 = vadd.f32 %v618, %v696
  %v698 = vand.u32 %v70, 4294901760
  %699 = vmatmul.f32.gmra.mxu0 %v698
  %v700 = vpop.f32.mrf.mxu0
  %v701 = vadd.f32 %v622, %v700
  %v702 = vand.u32 %v73, 4294901760
  %703 = vmatmul.f32.gmra.mxu0 %v702
  %v704 = vpop.f32.mrf.mxu0
  %v705 = vadd.f32 %v626, %v704
  %v706 = vand.u32 %v76, 4294901760
  %707 = vmatmul.f32.gmra.mxu0 %v706
  %v708 = vpop.f32.mrf.mxu0
  %v709 = vadd.f32 %v630, %v708
  %v710 = vand.u32 %v79, 4294901760
  %711 = vmatmul.f32.gmra.mxu0 %v710
  %v712 = vpop.f32.mrf.mxu0
  %v713 = vadd.f32 %v634, %v712
  %v714 = vand.u32 %v82, 4294901760
  %715 = vmatmul.f32.gmra.mxu0 %v714
  %v716 = vpop.f32.mrf.mxu0
  %v717 = vadd.f32 %v638, %v716
  %718 = vdwg.mxu0
  %719 = vmatpush.msra.mxu0 0.0
  %720 = vmatpush.msra.mxu0 0.0
  %721 = vmatpush.msra.mxu0 0.0
  %722 = vmatpush.msra.mxu0 0.0
  %723 = vmatpush.msra.mxu0 0.0
  %724 = vmatpush.msra.mxu0 0.0
  %v725 = vand.u32 %v43, 4294901760
  %726 = vmatpush.msra.mxu0 %v725
  %v727 = vand.u32 %v41, 4294901760
  %728 = vmatpush.msra.mxu0 %v727
  %v729 = vand.u32 %v39, 4294901760
  %730 = vmatpush.msra.mxu0 %v729
  %v731 = vand.u32 %v37, 4294901760
  %732 = vmatpush.msra.mxu0 %v731
  %v733 = vand.u32 %v35, 4294901760
  %734 = vmatpush.msra.mxu0 %v733
  %v735 = vand.u32 %v33, 4294901760
  %736 = vmatpush.msra.mxu0 %v735
  %v737 = vand.u32 %v31, 4294901760
  %738 = vmatpush.msra.mxu0 %v737
  %v739 = vand.u32 %v29, 4294901760
  %740 = vmatpush.msra.mxu0 %v739
  %v741 = vand.u32 %v27, 4294901760
  %742 = vmatpush.msra.mxu0 %v741
  %v743 = vand.u32 %v25, 4294901760
  %744 = vmatpush.msra.mxu0 %v743
  %v745 = vand.u32 %v46, 4294901760
  %v746 = vsub.f32 %v46, %v745
  %v747 = vand.u32 %v746, 4294901760
  %v748 = vsub.f32 %v746, %v747
  %v749 = vand.u32 %v748, 4294901760
  %750 = vmatmul.f32.gmra.mxu0 %v749
  %v751 = vpop.f32.mrf.mxu0
  %v752 = vadd.f32 0.0, %v751
  %v753 = vand.u32 %v49, 4294901760
  %v754 = vsub.f32 %v49, %v753
  %v755 = vand.u32 %v754, 4294901760
  %v756 = vsub.f32 %v754, %v755
  %v757 = vand.u32 %v756, 4294901760
  %758 = vmatmul.f32.gmra.mxu0 %v757
  %v759 = vpop.f32.mrf.mxu0
  %v760 = vadd.f32 0.0, %v759
  %v761 = vand.u32 %v52, 4294901760
  %v762 = vsub.f32 %v52, %v761
  %v763 = vand.u32 %v762, 4294901760
  %v764 = vsub.f32 %v762, %v763
  %v765 = vand.u32 %v764, 4294901760
  %766 = vmatmul.f32.gmra.mxu0 %v765
  %v767 = vpop.f32.mrf.mxu0
  %v768 = vadd.f32 0.0, %v767
  %v769 = vand.u32 %v55, 4294901760
  %v770 = vsub.f32 %v55, %v769
  %v771 = vand.u32 %v770, 4294901760
  %v772 = vsub.f32 %v770, %v771
  %v773 = vand.u32 %v772, 4294901760
  %774 = vmatmul.f32.gmra.mxu0 %v773
  %v775 = vpop.f32.mrf.mxu0
  %v776 = vadd.f32 0.0, %v775
  %v777 = vand.u32 %v58, 4294901760
  %v778 = vsub.f32 %v58, %v777
  %v779 = vand.u32 %v778, 4294901760
  %v780 = vsub.f32 %v778, %v779
  %v781 = vand.u32 %v780, 4294901760
  %782 = vmatmul.f32.gmra.mxu0 %v781
  %v783 = vpop.f32.mrf.mxu0
  %v784 = vadd.f32 0.0, %v783
  %v785 = vand.u32 %v61, 4294901760
  %v786 = vsub.f32 %v61, %v785
  %v787 = vand.u32 %v786, 4294901760
  %v788 = vsub.f32 %v786, %v787
  %v789 = vand.u32 %v788, 4294901760
  %790 = vmatmul.f32.gmra.mxu0 %v789
  %v791 = vpop.f32.mrf.mxu0
  %v792 = vadd.f32 0.0, %v791
  %v793 = vand.u32 %v64, 4294901760
  %v794 = vsub.f32 %v64, %v793
  %v795 = vand.u32 %v794, 4294901760
  %v796 = vsub.f32 %v794, %v795
  %v797 = vand.u32 %v796, 4294901760
  %798 = vmatmul.f32.gmra.mxu0 %v797
  %v799 = vpop.f32.mrf.mxu0
  %v800 = vadd.f32 0.0, %v799
  %v801 = vand.u32 %v67, 4294901760
  %v802 = vsub.f32 %v67, %v801
  %v803 = vand.u32 %v802, 4294901760
  %v804 = vsub.f32 %v802, %v803
  %v805 = vand.u32 %v804, 4294901760
  %806 = vmatmul.f32.gmra.mxu0 %v805
  %v807 = vpop.f32.mrf.mxu0
  %v808 = vadd.f32 0.0, %v807
  %v809 = vand.u32 %v70, 4294901760
  %v810 = vsub.f32 %v70, %v809
  %v811 = vand.u32 %v810, 4294901760
  %v812 = vsub.f32 %v810, %v811
  %v813 = vand.u32 %v812, 4294901760
  %814 = vmatmul.f32.gmra.mxu0 %v813
  %v815 = vpop.f32.mrf.mxu0
  %v816 = vadd.f32 0.0, %v815
  %v817 = vand.u32 %v73, 4294901760
  %v818 = vsub.f32 %v73, %v817
  %v819 = vand.u32 %v818, 4294901760
  %v820 = vsub.f32 %v818, %v819
  %v821 = vand.u32 %v820, 4294901760
  %822 = vmatmul.f32.gmra.mxu0 %v821
  %v823 = vpop.f32.mrf.mxu0
  %v824 = vadd.f32 0.0, %v823
  %v825 = vand.u32 %v76, 4294901760
  %v826 = vsub.f32 %v76, %v825
  %v827 = vand.u32 %v826, 4294901760
  %v828 = vsub.f32 %v826, %v827
  %v829 = vand.u32 %v828, 4294901760
  %830 = vmatmul.f32.gmra.mxu0 %v829
  %v831 = vpop.f32.mrf.mxu0
  %v832 = vadd.f32 0.0, %v831
  %v833 = vand.u32 %v79, 4294901760
  %v834 = vsub.f32 %v79, %v833
  %v835 = vand.u32 %v834, 4294901760
  %v836 = vsub.f32 %v834, %v835
  %v837 = vand.u32 %v836, 4294901760
  %838 = vmatmul.f32.gmra.mxu0 %v837
  %v839 = vpop.f32.mrf.mxu0
  %v840 = vadd.f32 0.0, %v839
  %v841 = vand.u32 %v82, 4294901760
  %v842 = vsub.f32 %v82, %v841
  %v843 = vand.u32 %v842, 4294901760
  %v844 = vsub.f32 %v842, %v843
  %v845 = vand.u32 %v844, 4294901760
  %846 = vmatmul.f32.gmra.mxu0 %v845
  %v847 = vpop.f32.mrf.mxu0
  %v848 = vadd.f32 0.0, %v847
  %849 = vdwg.mxu0
  %850 = vmatpush.msra.mxu0 0.0
  %851 = vmatpush.msra.mxu0 0.0
  %852 = vmatpush.msra.mxu0 0.0
  %853 = vmatpush.msra.mxu0 0.0
  %854 = vmatpush.msra.mxu0 0.0
  %855 = vmatpush.msra.mxu0 0.0
  %v856 = vand.u32 %v43, 4294901760
  %v857 = vsub.f32 %v43, %v856
  %v858 = vand.u32 %v857, 4294901760
  %v859 = vsub.f32 %v857, %v858
  %v860 = vand.u32 %v859, 4294901760
  %861 = vmatpush.msra.mxu0 %v860
  %v862 = vand.u32 %v41, 4294901760
  %v863 = vsub.f32 %v41, %v862
  %v864 = vand.u32 %v863, 4294901760
  %v865 = vsub.f32 %v863, %v864
  %v866 = vand.u32 %v865, 4294901760
  %867 = vmatpush.msra.mxu0 %v866
  %v868 = vand.u32 %v39, 4294901760
  %v869 = vsub.f32 %v39, %v868
  %v870 = vand.u32 %v869, 4294901760
  %v871 = vsub.f32 %v869, %v870
  %v872 = vand.u32 %v871, 4294901760
  %873 = vmatpush.msra.mxu0 %v872
  %v874 = vand.u32 %v37, 4294901760
  %v875 = vsub.f32 %v37, %v874
  %v876 = vand.u32 %v875, 4294901760
  %v877 = vsub.f32 %v875, %v876
  %v878 = vand.u32 %v877, 4294901760
  %879 = vmatpush.msra.mxu0 %v878
  %v880 = vand.u32 %v35, 4294901760
  %v881 = vsub.f32 %v35, %v880
  %v882 = vand.u32 %v881, 4294901760
  %v883 = vsub.f32 %v881, %v882
  %v884 = vand.u32 %v883, 4294901760
  %885 = vmatpush.msra.mxu0 %v884
  %v886 = vand.u32 %v33, 4294901760
  %v887 = vsub.f32 %v33, %v886
  %v888 = vand.u32 %v887, 4294901760
  %v889 = vsub.f32 %v887, %v888
  %v890 = vand.u32 %v889, 4294901760
  %891 = vmatpush.msra.mxu0 %v890
  %v892 = vand.u32 %v31, 4294901760
  %v893 = vsub.f32 %v31, %v892
  %v894 = vand.u32 %v893, 4294901760
  %v895 = vsub.f32 %v893, %v894
  %v896 = vand.u32 %v895, 4294901760
  %897 = vmatpush.msra.mxu0 %v896
  %v898 = vand.u32 %v29, 4294901760
  %v899 = vsub.f32 %v29, %v898
  %v900 = vand.u32 %v899, 4294901760
  %v901 = vsub.f32 %v899, %v900
  %v902 = vand.u32 %v901, 4294901760
  %903 = vmatpush.msra.mxu0 %v902
  %v904 = vand.u32 %v27, 4294901760
  %v905 = vsub.f32 %v27, %v904
  %v906 = vand.u32 %v905, 4294901760
  %v907 = vsub.f32 %v905, %v906
  %v908 = vand.u32 %v907, 4294901760
  %909 = vmatpush.msra.mxu0 %v908
  %v910 = vand.u32 %v25, 4294901760
  %v911 = vsub.f32 %v25, %v910
  %v912 = vand.u32 %v911, 4294901760
  %v913 = vsub.f32 %v911, %v912
  %v914 = vand.u32 %v913, 4294901760
  %915 = vmatpush.msra.mxu0 %v914
  %v916 = vand.u32 %v46, 4294901760
  %917 = vmatmul.f32.gmra.mxu0 %v916
  %v918 = vpop.f32.mrf.mxu0
  %v919 = vadd.f32 %v752, %v918
  %v920 = vand.u32 %v49, 4294901760
  %921 = vmatmul.f32.gmra.mxu0 %v920
  %v922 = vpop.f32.mrf.mxu0
  %v923 = vadd.f32 %v760, %v922
  %v924 = vand.u32 %v52, 4294901760
  %925 = vmatmul.f32.gmra.mxu0 %v924
  %v926 = vpop.f32.mrf.mxu0
  %v927 = vadd.f32 %v768, %v926
  %v928 = vand.u32 %v55, 4294901760
  %929 = vmatmul.f32.gmra.mxu0 %v928
  %v930 = vpop.f32.mrf.mxu0
  %v931 = vadd.f32 %v776, %v930
  %v932 = vand.u32 %v58, 4294901760
  %933 = vmatmul.f32.gmra.mxu0 %v932
  %v934 = vpop.f32.mrf.mxu0
  %v935 = vadd.f32 %v784, %v934
  %v936 = vand.u32 %v61, 4294901760
  %937 = vmatmul.f32.gmra.mxu0 %v936
  %v938 = vpop.f32.mrf.mxu0
  %v939 = vadd.f32 %v792, %v938
  %v940 = vand.u32 %v64, 4294901760
  %941 = vmatmul.f32.gmra.mxu0 %v940
  %v942 = vpop.f32.mrf.mxu0
  %v943 = vadd.f32 %v800, %v942
  %v944 = vand.u32 %v67, 4294901760
  %945 = vmatmul.f32.gmra.mxu0 %v944
  %v946 = vpop.f32.mrf.mxu0
  %v947 = vadd.f32 %v808, %v946
  %v948 = vand.u32 %v70, 4294901760
  %949 = vmatmul.f32.gmra.mxu0 %v948
  %v950 = vpop.f32.mrf.mxu0
  %v951 = vadd.f32 %v816, %v950
  %v952 = vand.u32 %v73, 4294901760
  %953 = vmatmul.f32.gmra.mxu0 %v952
  %v954 = vpop.f32.mrf.mxu0
  %v955 = vadd.f32 %v824, %v954
  %v956 = vand.u32 %v76, 4294901760
  %957 = vmatmul.f32.gmra.mxu0 %v956
  %v958 = vpop.f32.mrf.mxu0
  %v959 = vadd.f32 %v832, %v958
  %v960 = vand.u32 %v79, 4294901760
  %961 = vmatmul.f32.gmra.mxu0 %v960
  %v962 = vpop.f32.mrf.mxu0
  %v963 = vadd.f32 %v840, %v962
  %v964 = vand.u32 %v82, 4294901760
  %965 = vmatmul.f32.gmra.mxu0 %v964
  %v966 = vpop.f32.mrf.mxu0
  %v967 = vadd.f32 %v848, %v966
  %968 = vdwg.mxu0
  %969 = vmatpush.msra.mxu0 0.0
  %970 = vmatpush.msra.mxu0 0.0
  %971 = vmatpush.msra.mxu0 0.0
  %972 = vmatpush.msra.mxu0 0.0
  %973 = vmatpush.msra.mxu0 0.0
  %974 = vmatpush.msra.mxu0 0.0
  %v975 = vand.u32 %v43, 4294901760
  %v976 = vsub.f32 %v43, %v975
  %977 = vmatpush.msra.mxu0 %v976
  %v978 = vand.u32 %v41, 4294901760
  %v979 = vsub.f32 %v41, %v978
  %980 = vmatpush.msra.mxu0 %v979
  %v981 = vand.u32 %v39, 4294901760
  %v982 = vsub.f32 %v39, %v981
  %983 = vmatpush.msra.mxu0 %v982
  %v984 = vand.u32 %v37, 4294901760
  %v985 = vsub.f32 %v37, %v984
  %986 = vmatpush.msra.mxu0 %v985
  %v987 = vand.u32 %v35, 4294901760
  %v988 = vsub.f32 %v35, %v987
  %989 = vmatpush.msra.mxu0 %v988
  %v990 = vand.u32 %v33, 4294901760
  %v991 = vsub.f32 %v33, %v990
  %992 = vmatpush.msra.mxu0 %v991
  %v993 = vand.u32 %v31, 4294901760
  %v994 = vsub.f32 %v31, %v993
  %995 = vmatpush.msra.mxu0 %v994
  %v996 = vand.u32 %v29, 4294901760
  %v997 = vsub.f32 %v29, %v996
  %998 = vmatpush.msra.mxu0 %v997
  %v999 = vand.u32 %v27, 4294901760
  %v1000 = vsub.f32 %v27, %v999
  %1001 = vmatpush.msra.mxu0 %v1000
  %v1002 = vand.u32 %v25, 4294901760
  %v1003 = vsub.f32 %v25, %v1002
  %1004 = vmatpush.msra.mxu0 %v1003
  %v1005 = vand.u32 %v46, 4294901760
  %v1006 = vsub.f32 %v46, %v1005
  %1007 = vmatmul.f32.gmra.mxu0 %v1006
  %v1008 = vpop.f32.mrf.mxu0
  %v1009 = vadd.f32 %v919, %v1008
  %v1010 = vand.u32 %v49, 4294901760
  %v1011 = vsub.f32 %v49, %v1010
  %1012 = vmatmul.f32.gmra.mxu0 %v1011
  %v1013 = vpop.f32.mrf.mxu0
  %v1014 = vadd.f32 %v923, %v1013
  %v1015 = vand.u32 %v52, 4294901760
  %v1016 = vsub.f32 %v52, %v1015
  %1017 = vmatmul.f32.gmra.mxu0 %v1016
  %v1018 = vpop.f32.mrf.mxu0
  %v1019 = vadd.f32 %v927, %v1018
  %v1020 = vand.u32 %v55, 4294901760
  %v1021 = vsub.f32 %v55, %v1020
  %1022 = vmatmul.f32.gmra.mxu0 %v1021
  %v1023 = vpop.f32.mrf.mxu0
  %v1024 = vadd.f32 %v931, %v1023
  %v1025 = vand.u32 %v58, 4294901760
  %v1026 = vsub.f32 %v58, %v1025
  %1027 = vmatmul.f32.gmra.mxu0 %v1026
  %v1028 = vpop.f32.mrf.mxu0
  %v1029 = vadd.f32 %v935, %v1028
  %v1030 = vand.u32 %v61, 4294901760
  %v1031 = vsub.f32 %v61, %v1030
  %1032 = vmatmul.f32.gmra.mxu0 %v1031
  %v1033 = vpop.f32.mrf.mxu0
  %v1034 = vadd.f32 %v939, %v1033
  %v1035 = vand.u32 %v64, 4294901760
  %v1036 = vsub.f32 %v64, %v1035
  %1037 = vmatmul.f32.gmra.mxu0 %v1036
  %v1038 = vpop.f32.mrf.mxu0
  %v1039 = vadd.f32 %v943, %v1038
  %v1040 = vand.u32 %v67, 4294901760
  %v1041 = vsub.f32 %v67, %v1040
  %1042 = vmatmul.f32.gmra.mxu0 %v1041
  %v1043 = vpop.f32.mrf.mxu0
  %v1044 = vadd.f32 %v947, %v1043
  %v1045 = vand.u32 %v70, 4294901760
  %v1046 = vsub.f32 %v70, %v1045
  %1047 = vmatmul.f32.gmra.mxu0 %v1046
  %v1048 = vpop.f32.mrf.mxu0
  %v1049 = vadd.f32 %v951, %v1048
  %v1050 = vand.u32 %v73, 4294901760
  %v1051 = vsub.f32 %v73, %v1050
  %1052 = vmatmul.f32.gmra.mxu0 %v1051
  %v1053 = vpop.f32.mrf.mxu0
  %v1054 = vadd.f32 %v955, %v1053
  %v1055 = vand.u32 %v76, 4294901760
  %v1056 = vsub.f32 %v76, %v1055
  %1057 = vmatmul.f32.gmra.mxu0 %v1056
  %v1058 = vpop.f32.mrf.mxu0
  %v1059 = vadd.f32 %v959, %v1058
  %v1060 = vand.u32 %v79, 4294901760
  %v1061 = vsub.f32 %v79, %v1060
  %1062 = vmatmul.f32.gmra.mxu0 %v1061
  %v1063 = vpop.f32.mrf.mxu0
  %v1064 = vadd.f32 %v963, %v1063
  %v1065 = vand.u32 %v82, 4294901760
  %v1066 = vsub.f32 %v82, %v1065
  %1067 = vmatmul.f32.gmra.mxu0 %v1066
  %v1068 = vpop.f32.mrf.mxu0
  %v1069 = vadd.f32 %v967, %v1068
  %1070 = vdwg.mxu0
  %1071 = vmatpush.msra.mxu0 0.0
  %1072 = vmatpush.msra.mxu0 0.0
  %1073 = vmatpush.msra.mxu0 0.0
  %1074 = vmatpush.msra.mxu0 0.0
  %1075 = vmatpush.msra.mxu0 0.0
  %1076 = vmatpush.msra.mxu0 0.0
  %v1077 = vand.u32 %v43, 4294901760
  %1078 = vmatpush.msra.mxu0 %v1077
  %v1079 = vand.u32 %v41, 4294901760
  %1080 = vmatpush.msra.mxu0 %v1079
  %v1081 = vand.u32 %v39, 4294901760
  %1082 = vmatpush.msra.mxu0 %v1081
  %v1083 = vand.u32 %v37, 4294901760
  %1084 = vmatpush.msra.mxu0 %v1083
  %v1085 = vand.u32 %v35, 4294901760
  %1086 = vmatpush.msra.mxu0 %v1085
  %v1087 = vand.u32 %v33, 4294901760
  %1088 = vmatpush.msra.mxu0 %v1087
  %v1089 = vand.u32 %v31, 4294901760
  %1090 = vmatpush.msra.mxu0 %v1089
  %v1091 = vand.u32 %v29, 4294901760
  %1092 = vmatpush.msra.mxu0 %v1091
  %v1093 = vand.u32 %v27, 4294901760
  %1094 = vmatpush.msra.mxu0 %v1093
  %v1095 = vand.u32 %v25, 4294901760
  %1096 = vmatpush.msra.mxu0 %v1095
  %v1097 = vand.u32 %v46, 4294901760
  %v1098 = vsub.f32 %v46, %v1097
  %v1099 = vand.u32 %v1098, 4294901760
  %1100 = vmatmul.f32.gmra.mxu0 %v1099
  %v1101 = vpop.f32.mrf.mxu0
  %v1102 = vadd.f32 %v1009, %v1101
  %v1103 = vand.u32 %v49, 4294901760
  %v1104 = vsub.f32 %v49, %v1103
  %v1105 = vand.u32 %v1104, 4294901760
  %1106 = vmatmul.f32.gmra.mxu0 %v1105
  %v1107 = vpop.f32.mrf.mxu0
  %v1108 = vadd.f32 %v1014, %v1107
  %v1109 = vand.u32 %v52, 4294901760
  %v1110 = vsub.f32 %v52, %v1109
  %v1111 = vand.u32 %v1110, 4294901760
  %1112 = vmatmul.f32.gmra.mxu0 %v1111
  %v1113 = vpop.f32.mrf.mxu0
  %v1114 = vadd.f32 %v1019, %v1113
  %v1115 = vand.u32 %v55, 4294901760
  %v1116 = vsub.f32 %v55, %v1115
  %v1117 = vand.u32 %v1116, 4294901760
  %1118 = vmatmul.f32.gmra.mxu0 %v1117
  %v1119 = vpop.f32.mrf.mxu0
  %v1120 = vadd.f32 %v1024, %v1119
  %v1121 = vand.u32 %v58, 4294901760
  %v1122 = vsub.f32 %v58, %v1121
  %v1123 = vand.u32 %v1122, 4294901760
  %1124 = vmatmul.f32.gmra.mxu0 %v1123
  %v1125 = vpop.f32.mrf.mxu0
  %v1126 = vadd.f32 %v1029, %v1125
  %v1127 = vand.u32 %v61, 4294901760
  %v1128 = vsub.f32 %v61, %v1127
  %v1129 = vand.u32 %v1128, 4294901760
  %1130 = vmatmul.f32.gmra.mxu0 %v1129
  %v1131 = vpop.f32.mrf.mxu0
  %v1132 = vadd.f32 %v1034, %v1131
  %v1133 = vand.u32 %v64, 4294901760
  %v1134 = vsub.f32 %v64, %v1133
  %v1135 = vand.u32 %v1134, 4294901760
  %1136 = vmatmul.f32.gmra.mxu0 %v1135
  %v1137 = vpop.f32.mrf.mxu0
  %v1138 = vadd.f32 %v1039, %v1137
  %v1139 = vand.u32 %v67, 4294901760
  %v1140 = vsub.f32 %v67, %v1139
  %v1141 = vand.u32 %v1140, 4294901760
  %1142 = vmatmul.f32.gmra.mxu0 %v1141
  %v1143 = vpop.f32.mrf.mxu0
  %v1144 = vadd.f32 %v1044, %v1143
  %v1145 = vand.u32 %v70, 4294901760
  %v1146 = vsub.f32 %v70, %v1145
  %v1147 = vand.u32 %v1146, 4294901760
  %1148 = vmatmul.f32.gmra.mxu0 %v1147
  %v1149 = vpop.f32.mrf.mxu0
  %v1150 = vadd.f32 %v1049, %v1149
  %v1151 = vand.u32 %v73, 4294901760
  %v1152 = vsub.f32 %v73, %v1151
  %v1153 = vand.u32 %v1152, 4294901760
  %1154 = vmatmul.f32.gmra.mxu0 %v1153
  %v1155 = vpop.f32.mrf.mxu0
  %v1156 = vadd.f32 %v1054, %v1155
  %v1157 = vand.u32 %v76, 4294901760
  %v1158 = vsub.f32 %v76, %v1157
  %v1159 = vand.u32 %v1158, 4294901760
  %1160 = vmatmul.f32.gmra.mxu0 %v1159
  %v1161 = vpop.f32.mrf.mxu0
  %v1162 = vadd.f32 %v1059, %v1161
  %v1163 = vand.u32 %v79, 4294901760
  %v1164 = vsub.f32 %v79, %v1163
  %v1165 = vand.u32 %v1164, 4294901760
  %1166 = vmatmul.f32.gmra.mxu0 %v1165
  %v1167 = vpop.f32.mrf.mxu0
  %v1168 = vadd.f32 %v1064, %v1167
  %v1169 = vand.u32 %v82, 4294901760
  %v1170 = vsub.f32 %v82, %v1169
  %v1171 = vand.u32 %v1170, 4294901760
  %1172 = vmatmul.f32.gmra.mxu0 %v1171
  %v1173 = vpop.f32.mrf.mxu0
  %v1174 = vadd.f32 %v1069, %v1173
  %1175 = vdwg.mxu0
  %1176 = vmatpush.msra.mxu0 0.0
  %1177 = vmatpush.msra.mxu0 0.0
  %1178 = vmatpush.msra.mxu0 0.0
  %1179 = vmatpush.msra.mxu0 0.0
  %1180 = vmatpush.msra.mxu0 0.0
  %1181 = vmatpush.msra.mxu0 0.0
  %v1182 = vand.u32 %v43, 4294901760
  %v1183 = vsub.f32 %v43, %v1182
  %v1184 = vand.u32 %v1183, 4294901760
  %1185 = vmatpush.msra.mxu0 %v1184
  %v1186 = vand.u32 %v41, 4294901760
  %v1187 = vsub.f32 %v41, %v1186
  %v1188 = vand.u32 %v1187, 4294901760
  %1189 = vmatpush.msra.mxu0 %v1188
  %v1190 = vand.u32 %v39, 4294901760
  %v1191 = vsub.f32 %v39, %v1190
  %v1192 = vand.u32 %v1191, 4294901760
  %1193 = vmatpush.msra.mxu0 %v1192
  %v1194 = vand.u32 %v37, 4294901760
  %v1195 = vsub.f32 %v37, %v1194
  %v1196 = vand.u32 %v1195, 4294901760
  %1197 = vmatpush.msra.mxu0 %v1196
  %v1198 = vand.u32 %v35, 4294901760
  %v1199 = vsub.f32 %v35, %v1198
  %v1200 = vand.u32 %v1199, 4294901760
  %1201 = vmatpush.msra.mxu0 %v1200
  %v1202 = vand.u32 %v33, 4294901760
  %v1203 = vsub.f32 %v33, %v1202
  %v1204 = vand.u32 %v1203, 4294901760
  %1205 = vmatpush.msra.mxu0 %v1204
  %v1206 = vand.u32 %v31, 4294901760
  %v1207 = vsub.f32 %v31, %v1206
  %v1208 = vand.u32 %v1207, 4294901760
  %1209 = vmatpush.msra.mxu0 %v1208
  %v1210 = vand.u32 %v29, 4294901760
  %v1211 = vsub.f32 %v29, %v1210
  %v1212 = vand.u32 %v1211, 4294901760
  %1213 = vmatpush.msra.mxu0 %v1212
  %v1214 = vand.u32 %v27, 4294901760
  %v1215 = vsub.f32 %v27, %v1214
  %v1216 = vand.u32 %v1215, 4294901760
  %1217 = vmatpush.msra.mxu0 %v1216
  %v1218 = vand.u32 %v25, 4294901760
  %v1219 = vsub.f32 %v25, %v1218
  %v1220 = vand.u32 %v1219, 4294901760
  %1221 = vmatpush.msra.mxu0 %v1220
  %v1222 = vand.u32 %v46, 4294901760
  %1223 = vmatmul.f32.gmra.mxu0 %v1222
  %v1224 = vpop.f32.mrf.mxu0
  %v1225 = vadd.f32 %v1102, %v1224
  %v1226 = vand.u32 %v49, 4294901760
  %1227 = vmatmul.f32.gmra.mxu0 %v1226
  %v1228 = vpop.f32.mrf.mxu0
  %v1229 = vadd.f32 %v1108, %v1228
  %v1230 = vand.u32 %v52, 4294901760
  %1231 = vmatmul.f32.gmra.mxu0 %v1230
  %v1232 = vpop.f32.mrf.mxu0
  %v1233 = vadd.f32 %v1114, %v1232
  %v1234 = vand.u32 %v55, 4294901760
  %1235 = vmatmul.f32.gmra.mxu0 %v1234
  %v1236 = vpop.f32.mrf.mxu0
  %v1237 = vadd.f32 %v1120, %v1236
  %v1238 = vand.u32 %v58, 4294901760
  %1239 = vmatmul.f32.gmra.mxu0 %v1238
  %v1240 = vpop.f32.mrf.mxu0
  %v1241 = vadd.f32 %v1126, %v1240
  %v1242 = vand.u32 %v61, 4294901760
  %1243 = vmatmul.f32.gmra.mxu0 %v1242
  %v1244 = vpop.f32.mrf.mxu0
  %v1245 = vadd.f32 %v1132, %v1244
  %v1246 = vand.u32 %v64, 4294901760
  %1247 = vmatmul.f32.gmra.mxu0 %v1246
  %v1248 = vpop.f32.mrf.mxu0
  %v1249 = vadd.f32 %v1138, %v1248
  %v1250 = vand.u32 %v67, 4294901760
  %1251 = vmatmul.f32.gmra.mxu0 %v1250
  %v1252 = vpop.f32.mrf.mxu0
  %v1253 = vadd.f32 %v1144, %v1252
  %v1254 = vand.u32 %v70, 4294901760
  %1255 = vmatmul.f32.gmra.mxu0 %v1254
  %v1256 = vpop.f32.mrf.mxu0
  %v1257 = vadd.f32 %v1150, %v1256
  %v1258 = vand.u32 %v73, 4294901760
  %1259 = vmatmul.f32.gmra.mxu0 %v1258
  %v1260 = vpop.f32.mrf.mxu0
  %v1261 = vadd.f32 %v1156, %v1260
  %v1262 = vand.u32 %v76, 4294901760
  %1263 = vmatmul.f32.gmra.mxu0 %v1262
  %v1264 = vpop.f32.mrf.mxu0
  %v1265 = vadd.f32 %v1162, %v1264
  %v1266 = vand.u32 %v79, 4294901760
  %1267 = vmatmul.f32.gmra.mxu0 %v1266
  %v1268 = vpop.f32.mrf.mxu0
  %v1269 = vadd.f32 %v1168, %v1268
  %v1270 = vand.u32 %v82, 4294901760
  %1271 = vmatmul.f32.gmra.mxu0 %v1270
  %v1272 = vpop.f32.mrf.mxu0
  %v1273 = vadd.f32 %v1174, %v1272
  %1274 = vdwg.mxu0
  %1275 = vmatpush.msra.mxu0 0.0
  %1276 = vmatpush.msra.mxu0 0.0
  %1277 = vmatpush.msra.mxu0 0.0
  %1278 = vmatpush.msra.mxu0 0.0
  %1279 = vmatpush.msra.mxu0 0.0
  %1280 = vmatpush.msra.mxu0 0.0
  %v1281 = vand.u32 %v43, 4294901760
  %1282 = vmatpush.msra.mxu0 %v1281
  %v1283 = vand.u32 %v41, 4294901760
  %1284 = vmatpush.msra.mxu0 %v1283
  %v1285 = vand.u32 %v39, 4294901760
  %1286 = vmatpush.msra.mxu0 %v1285
  %v1287 = vand.u32 %v37, 4294901760
  %1288 = vmatpush.msra.mxu0 %v1287
  %v1289 = vand.u32 %v35, 4294901760
  %1290 = vmatpush.msra.mxu0 %v1289
  %v1291 = vand.u32 %v33, 4294901760
  %1292 = vmatpush.msra.mxu0 %v1291
  %v1293 = vand.u32 %v31, 4294901760
  %1294 = vmatpush.msra.mxu0 %v1293
  %v1295 = vand.u32 %v29, 4294901760
  %1296 = vmatpush.msra.mxu0 %v1295
  %v1297 = vand.u32 %v27, 4294901760
  %1298 = vmatpush.msra.mxu0 %v1297
  %v1299 = vand.u32 %v25, 4294901760
  %1300 = vmatpush.msra.mxu0 %v1299
  %v1301 = vand.u32 %v46, 4294901760
  %1302 = vmatmul.f32.gmra.mxu0 %v1301
  %v1303 = vpop.f32.mrf.mxu0
  %v1304 = vadd.f32 %v1225, %v1303
  %v1305 = vand.u32 %v49, 4294901760
  %1306 = vmatmul.f32.gmra.mxu0 %v1305
  %v1307 = vpop.f32.mrf.mxu0
  %v1308 = vadd.f32 %v1229, %v1307
  %v1309 = vand.u32 %v52, 4294901760
  %1310 = vmatmul.f32.gmra.mxu0 %v1309
  %v1311 = vpop.f32.mrf.mxu0
  %v1312 = vadd.f32 %v1233, %v1311
  %v1313 = vand.u32 %v55, 4294901760
  %1314 = vmatmul.f32.gmra.mxu0 %v1313
  %v1315 = vpop.f32.mrf.mxu0
  %v1316 = vadd.f32 %v1237, %v1315
  %v1317 = vand.u32 %v58, 4294901760
  %1318 = vmatmul.f32.gmra.mxu0 %v1317
  %v1319 = vpop.f32.mrf.mxu0
  %v1320 = vadd.f32 %v1241, %v1319
  %v1321 = vand.u32 %v61, 4294901760
  %1322 = vmatmul.f32.gmra.mxu0 %v1321
  %v1323 = vpop.f32.mrf.mxu0
  %v1324 = vadd.f32 %v1245, %v1323
  %v1325 = vand.u32 %v64, 4294901760
  %1326 = vmatmul.f32.gmra.mxu0 %v1325
  %v1327 = vpop.f32.mrf.mxu0
  %v1328 = vadd.f32 %v1249, %v1327
  %v1329 = vand.u32 %v67, 4294901760
  %1330 = vmatmul.f32.gmra.mxu0 %v1329
  %v1331 = vpop.f32.mrf.mxu0
  %v1332 = vadd.f32 %v1253, %v1331
  %v1333 = vand.u32 %v70, 4294901760
  %1334 = vmatmul.f32.gmra.mxu0 %v1333
  %v1335 = vpop.f32.mrf.mxu0
  %v1336 = vadd.f32 %v1257, %v1335
  %v1337 = vand.u32 %v73, 4294901760
  %1338 = vmatmul.f32.gmra.mxu0 %v1337
  %v1339 = vpop.f32.mrf.mxu0
  %v1340 = vadd.f32 %v1261, %v1339
  %v1341 = vand.u32 %v76, 4294901760
  %1342 = vmatmul.f32.gmra.mxu0 %v1341
  %v1343 = vpop.f32.mrf.mxu0
  %v1344 = vadd.f32 %v1265, %v1343
  %v1345 = vand.u32 %v79, 4294901760
  %1346 = vmatmul.f32.gmra.mxu0 %v1345
  %v1347 = vpop.f32.mrf.mxu0
  %v1348 = vadd.f32 %v1269, %v1347
  %v1349 = vand.u32 %v82, 4294901760
  %1350 = vmatmul.f32.gmra.mxu0 %v1349
  %v1351 = vpop.f32.mrf.mxu0
  %v1352 = vadd.f32 %v1273, %v1351
  %1353 = vdwg.mxu0
  %v1354 = vtanh.pop %v669
  %v1355 = vtanh.pop %v1304
  %v1356 = vtanh.pop %v673
  %v1357 = vtanh.pop %v1308
  %v1358 = vtanh.pop %v677
  %v1359 = vtanh.pop %v1312
  %v1360 = vtanh.pop %v681
  %v1361 = vtanh.pop %v1316
  %v1362 = vtanh.pop %v685
  %v1363 = vtanh.pop %v1320
  %v1364 = vtanh.pop %v689
  %v1365 = vtanh.pop %v1324
  %v1366 = vtanh.pop %v693
  %v1367 = vtanh.pop %v1328
  %v1368 = vtanh.pop %v697
  %v1369 = vtanh.pop %v1332
  %v1370 = vtanh.pop %v701
  %v1371 = vtanh.pop %v1336
  %v1372 = vtanh.pop %v705
  %v1373 = vtanh.pop %v1340
  %v1374 = vtanh.pop %v709
  %v1375 = vtanh.pop %v1344
  %v1376 = vtanh.pop %v713
  %v1377 = vtanh.pop %v1348
  %v1378 = vtanh.pop %v717
  %v1379 = vtanh.pop %v1352
  %1380 = vst [vmem:[%s2] sm:$0xff] %v1354
  %1381 = vst [vmem:[%s2 + $0x8] sm:$0xff] %v1355
  %1382 = vst [vmem:[%s2 + $0x10] sm:$0xff] %v1356
  %1383 = vst [vmem:[%s2 + $0x18] sm:$0xff] %v1357
  %1384 = vst [vmem:[%s2 + $0x20] sm:$0xff] %v1358
  %1385 = vst [vmem:[%s2 + $0x28] sm:$0xff] %v1359
  %1386 = vst [vmem:[%s2 + $0x30] sm:$0xff] %v1360
  %1387 = vst [vmem:[%s2 + $0x38] sm:$0xff] %v1361
  %1388 = vst [vmem:[%s2 + $0x40] sm:$0xff] %v1362
  %1389 = vst [vmem:[%s2 + $0x48] sm:$0xff] %v1363
  %1390 = vst [vmem:[%s2 + $0x50] sm:$0xff] %v1364
  %1391 = vst [vmem:[%s2 + $0x58] sm:$0xff] %v1365
  %1392 = vst [vmem:[%s2 + $0x60] sm:$0xff] %v1366
  %1393 = vst [vmem:[%s2 + $0x68] sm:$0xff] %v1367
  %1394 = vst [vmem:[%s2 + $0x70] sm:$0xff] %v1368
  %1395 = vst [vmem:[%s2 + $0x78] sm:$0xff] %v1369
  %1396 = vst [vmem:[%s2 + $0x80] sm:$0xff] %v1370
  %1397 = vst [vmem:[%s2 + $0x88] sm:$0xff] %v1371
  %1398 = vst [vmem:[%s2 + $0x90] sm:$0xff] %v1372
  %1399 = vst [vmem:[%s2 + $0x98] sm:$0xff] %v1373
  %1400 = vst [vmem:[%s2 + $0xa0] sm:$0xff] %v1374
  %1401 = vst [vmem:[%s2 + $0xa8] sm:$0xff] %v1375
  %1402 = vst [vmem:[%s2 + $0xb0] sm:$0xff] %v1376
  %1403 = vst [vmem:[%s2 + $0xb8] sm:$0xff] %v1377
  %1404 = vst [vmem:[%s2 + $0xc0] sm:$0xf] %v1378
  %1405 = vst [vmem:[%s2 + $0xc8] sm:$0xf] %v1379
  // Predicated region
  $region10: #{grouped_conv2d_tanh.1} parent=0 // pred_check
    _
  $region11: #{grouped_conv2d_tanh.1} parent=0 // pred_check_branch
    %1407 = sbr.rel (0) target = $region13
  $region12: #{grouped_conv2d_tanh.1} parent=0 // pred_region
    _
  $region13: #{grouped_conv2d_tanh.1} parent=0 // pred_fallthru
    _
  // Predicated region
  $region14: #{grouped_conv2d_tanh.1} parent=0 // pred_check
    _
  $region15: #{grouped_conv2d_tanh.1} parent=0 // pred_check_branch
    %1409 = sbr.rel (0) target = $region17
  $region16: #{grouped_conv2d_tanh.1} parent=0 // pred_region
    _
  $region17: #{grouped_conv2d_tanh.1} parent=0 // pred_fallthru
    _

</llo_original>
